<compile_context>
chip_gen: v7x
topology: tpu7x:2x2x1
jax: 0.10.0
libtpu: 0.0.40
codegen_flags: <defaults>
</compile_context>

<pallas_src>
import functools

import jax
import jax.numpy as jnp
import numpy as np
from jax.experimental import pallas as pl
from jax.experimental.pallas import tpu as pltpu


def _warp_kernel(src_ref, loc_ref, out_ref, *, K, R, C, CG):
    """One (batch, output-pixel-tile) grid step.

    src_ref : (C*R, K) bf16  source, rows = (channel, reduce-axis), contraction axis
                             last. Its block index depends only on the batch axis, so
                             it stays VMEM-resident across the inner tile axis.
    loc_ref : (2, T)   f32   sample coordinates of each output pixel in this tile:
                             row 0 = coordinate along the reduce axis   (domain [0,R-1])
                             row 1 = coordinate along the contract axis (domain [0,K-1])
    out_ref : (C, T)         warped output tile.
    """
    T = out_ref.shape[1]

    # Border padding == clamp of the (un-normalized) sample coordinate.
    cr = jnp.clip(loc_ref[0:1, :], 0.0, float(R - 1))          # (1, T)
    ck = jnp.clip(loc_ref[1:2, :], 0.0, float(K - 1))          # (1, T)

    # Tent (hat) weights == separable bilinear with border clamp:
    #   w[i] = max(0, 1 - |i - coord|) gives (1-frac) at floor(coord), frac at
    #   floor(coord)+1, 0 elsewhere, and exactly 1 at the clamped borders.
    kk = jax.lax.broadcasted_iota(jnp.int32, (K, T), 0).astype(jnp.float32)
    rr = jax.lax.broadcasted_iota(jnp.int32, (R, T), 0).astype(jnp.float32)
    khot = jnp.maximum(1.0 - jnp.abs(kk - ck), 0.0)            # (K, T) f32
    rhot = jnp.maximum(1.0 - jnp.abs(rr - cr), 0.0)            # (R, T) f32
    khot_bf = khot.astype(jnp.bfloat16)                        # MXU operand (f32 accum)

    # Channel groups bound the live (CG*R, T) f32 slab (VMEM pressure, worst on v7x)
    # while keeping the MXU M-dim >= 128 when possible. C is small & static -> unrolls.
    for c0 in range(0, C, CG):
        c1 = min(c0 + CG, C)
        # Stage 1 (MXU, single bf16 pass, f32 accumulation):
        #   a[(c - c0)*R + r, t] = sum_k src[c*R + r, k] * khot[k, t]
        a = jnp.dot(src_ref[c0 * R:c1 * R, :], khot_bf,
                    preferred_element_type=jnp.float32)        # (cg*R, T)
        # Stage 2 (VPU/XLU, f32): weight by rhot, reduce over R, one store per group.
        a3 = a.reshape(c1 - c0, R, T)
        out_ref[c0:c1, :] = jnp.sum(a3 * rhot[None, :, :],
                                    axis=1).astype(out_ref.dtype)


def _pick_tile(hw_pad, batch):
    """Lane-dense tile along the (padded) flattened pixel axis.

    Prefers multiples of 256 (v6e/v7x MXU N fill), capped at 512, and keeps at least
    two total grid points when batch == 1 so the v7x megacore has work.
    """
    assert hw_pad % 128 == 0
    tile = 128
    for t in (512, 256, 384, 128):
        if t <= hw_pad and hw_pad % t == 0:
            tile = t
            break
    if batch * (hw_pad // tile) < 2:
        for t in (256, 128):
            if hw_pad % t == 0 and hw_pad // t >= 2:
                tile = t
                break
    return tile


def transformer2d_warp(src, flow, tile_t=None):
    """Pallas equivalent of Transformer2D.forward(src, flow, padding_mode='border')."""
    B, C, H, W = src.shape
    assert flow.shape == (B, 2, H, W)
    HW = H * W
    out_dtype = src.dtype

    # MXU contracts over the larger spatial axis (better systolic K occupancy); the
    # cheap VPU stage-2 reduce then runs over the smaller axis.
    contract_w = W >= H
    if contract_w:
        K, R = W, H
        src2 = src.reshape(B, C * H, W)                         # (B, C*R, K)
    else:
        K, R = H, W
        src2 = jnp.transpose(src, (0, 1, 3, 2)).reshape(B, C * W, H)

    # Sample coordinates: new_locs = grid + flow (the module's pre-normalization
    # coordinates; its [-1,1] normalization cancels grid_sample's un-normalization
    # under align_corners=True). Built once here -> a single coord stream, no `base`
    # input and no per-tile in-kernel adds.
    rows = jax.lax.broadcasted_iota(jnp.float32, (H, W), 0)
    cols = jax.lax.broadcasted_iota(jnp.float32, (H, W), 1)
    base = jnp.stack([rows, cols], axis=0)[None]                # (1, 2, H, W)
    locs = (base + flow.astype(jnp.float32)).reshape(B, 2, HW)  # (row, col) coords
    if not contract_w:
        locs = locs[:, ::-1, :]                                 # -> (reduce, contract)

    # Pad the flattened pixel axis to a multiple of 128: tiles stay lane-dense and
    # per-step VMEM stays O(tile) at any resolution.
    HW_pad = -(-HW // 128) * 128
    if tile_t is None:
        tile_t = _pick_tile(HW_pad, B)
    assert HW_pad % tile_t == 0 and tile_t % 128 == 0, (HW_pad, tile_t)
    if HW_pad != HW:
        locs = jnp.pad(locs, ((0, 0), (0, 0), (0, HW_pad - HW)))
    n_tiles = HW_pad // tile_t

    # Cast src to bf16 once (MXU operand dtype): halves src HBM traffic and the
    # largest VMEM buffer; no per-tile casts inside the kernel.
    src2 = src2.astype(jnp.bfloat16)

    # Channel-group size: keep the live (CG*R, T) f32 slab <= ~4 MiB, but keep each
    # chunk's MXU M-dim (CG*R) >= 128 when C*R allows.
    slab = R * tile_t * 4
    cg_mem = max(1, (4 << 20) // slab)
    cg_m = -(-128 // R)
    CG = min(C, max(cg_m, cg_mem))

    # VMEM budget (double-buffered blocks + weights + live slab). Raise the scoped
    # limit only when it exceeds the 32 MiB default, capped below physical capacity.
    # (src is still double-buffered by the pipeline even though its block index only
    # changes with the batch axis; pinning it single-buffered via
    # pipeline_mode=pl.Buffered(1) would halve it, left out until that mode is
    # verified on this JAX version.)
    out_isz = jnp.dtype(out_dtype).itemsize
    vmem_need = (2 * (C * R * K * 2)
                 + 2 * (2 * tile_t * 4)
                 + 2 * (C * tile_t * out_isz)
                 + (K + R) * tile_t * 4 + K * tile_t * 2
                 + CG * R * tile_t * 4
                 + (2 << 20))
    cparams = dict(dimension_semantics=("parallel", "parallel"))
    if vmem_need > (32 << 20):
        try:
            cap = int(0.75 * pltpu.get_tpu_info().vmem_capacity_bytes)
        except Exception:
            cap = 48 << 20
        cparams["vmem_limit_bytes"] = int(min(vmem_need, cap))

    kernel = functools.partial(_warp_kernel, K=K, R=R, C=C, CG=CG)
    out_flat = pl.pallas_call(
        kernel,
        out_shape=jax.ShapeDtypeStruct((B, C, HW_pad), out_dtype),
        grid_spec=pltpu.PrefetchScalarGridSpec(
            num_scalar_prefetch=0,
            grid=(B, n_tiles),   # tile axis innermost: src block stays VMEM-resident
            in_specs=[
                pl.BlockSpec((pl.Squeezed(), C * R, K), lambda b, t: (b, 0, 0)),
                pl.BlockSpec((pl.Squeezed(), 2, tile_t), lambda b, t: (b, 0, t)),
            ],
            out_specs=pl.BlockSpec((pl.Squeezed(), C, tile_t), lambda b, t: (b, 0, t)),
        ),
        compiler_params=pltpu.CompilerParams(**cparams),
    )(src2, locs)
    return out_flat[:, :, :HW].reshape(B, C, H, W)


def reference_warp(src, flow):
    """Plain-JAX reference matching F.grid_sample(bilinear, align_corners=True, border)."""
    B, C, H, W = src.shape
    ii = jnp.arange(H, dtype=jnp.float32)[None, :, None]          # (1, H, 1)
    jj = jnp.arange(W, dtype=jnp.float32)[None, None, :]          # (1, 1, W)
    y = jnp.clip(ii + flow[:, 0], 0.0, float(H - 1))              # (B, H, W)
    x = jnp.clip(jj + flow[:, 1], 0.0, float(W - 1))
    y0f = jnp.floor(y)
    x0f = jnp.floor(x)
    wy1 = y - y0f
    wy0 = 1.0 - wy1
    wx1 = x - x0f
    wx0 = 1.0 - wx1
    y0 = y0f.astype(jnp.int32)
    x0 = x0f.astype(jnp.int32)
    y1 = jnp.minimum(y0 + 1, H - 1)
    x1 = jnp.minimum(x0 + 1, W - 1)

    flat = src.reshape(B, C, H * W)

    def gather(yi, xi):
        idx = (yi * W + xi).reshape(B, 1, H * W)
        idx = jnp.broadcast_to(idx, (B, C, H * W))
        return jnp.take_along_axis(flat, idx, axis=2).reshape(B, C, H, W)

    w00 = (wy0 * wx0)[:, None]
    w01 = (wy0 * wx1)[:, None]
    w10 = (wy1 * wx0)[:, None]
    w11 = (wy1 * wx1)[:, None]
    return (w00 * gather(y0, x0) + w01 * gather(y0, x1)
            + w10 * gather(y1, x0) + w11 * gather(y1, x1))


if __name__ == "__main__":
    key = jax.random.PRNGKey(0)

    # Case 1: square image, default (auto) tile.
    B, C, H, W = 2, 4, 16, 16
    k_src, k_flow, k2_src, k2_flow = jax.random.split(key, 4)
    src = jax.random.normal(k_src, (B, C, H, W), dtype=jnp.float32)
    # Random few-pixel flow, some vectors pointing out of bounds (exercises border mode).
    flow = 3.0 * jax.random.normal(k_flow, (B, 2, H, W), dtype=jnp.float32)

    ref = reference_warp(src, flow)
    out = jax.block_until_ready(transformer2d_warp(src, flow))
    assert out.shape == (B, C, H, W)
    # Tolerance covers the single-pass bf16 MXU matmul (operand RNE error <= 2^-9).
    np.testing.assert_allclose(np.asarray(out), np.asarray(ref), atol=2e-2, rtol=1e-2)

    # Case 1b: explicit multi-tile path (two output-pixel tiles of 128).
    out_tiled = jax.block_until_ready(transformer2d_warp(src, flow, tile_t=128))
    np.testing.assert_allclose(np.asarray(out_tiled), np.asarray(ref), atol=2e-2, rtol=1e-2)

    # Case 2: tall non-128-divisible image -> exercises HW padding + contract-over-H layout.
    B2, C2, H2, W2 = 2, 3, 20, 12
    src2 = jax.random.normal(k2_src, (B2, C2, H2, W2), dtype=jnp.float32)
    flow2 = 3.0 * jax.random.normal(k2_flow, (B2, 2, H2, W2), dtype=jnp.float32)
    ref2 = reference_warp(src2, flow2)
    out2 = jax.block_until_ready(transformer2d_warp(src2, flow2))
    assert out2.shape == (B2, C2, H2, W2)
    np.testing.assert_allclose(np.asarray(out2), np.asarray(ref2), atol=2e-2, rtol=1e-2)

    print("KERNEL_OK")
</pallas_src>

<mosaic_0001>
module attributes {stable_mosaic.version = 11 : i64} {
  func.func @_warp_kernel(%arg0: i32, %arg1: i32, %arg2: memref<1x64x16xbf16, #tpu.memory_space<vmem>>, %arg3: memref<1x2x256xf32, #tpu.memory_space<vmem>>, %arg4: memref<1x4x256xf32, #tpu.memory_space<vmem>>) attributes {dimension_semantics = [#tpu.dimension_semantics<parallel>, #tpu.dimension_semantics<parallel>], iteration_bounds = array<i64: 2, 1>, scalar_prefetch = 0 : i64, scratch_operands = 0 : i64, tpu.core_type = #tpu.core_type<tc>, window_params = [{transform_indices = @transform_0, window_bounds = array<i64: 1, 64, 16>}, {transform_indices = @transform_1, window_bounds = array<i64: 1, 2, 256>}, {transform_indices = @transform_2, window_bounds = array<i64: 1, 4, 256>}]} {
    %c0 = arith.constant 0 : index
    %c0_0 = arith.constant 0 : index
    %c0_1 = arith.constant 0 : index
    %0 = vector.load %arg3[%c0, %c0_0, %c0_1] : memref<1x2x256xf32, #tpu.memory_space<vmem>>, vector<1x1x256xf32>
    %1 = vector.shape_cast %0 : vector<1x1x256xf32> to vector<1x256xf32>
    %cst = arith.constant 0.000000e+00 : f32
    %cst_2 = arith.constant 1.500000e+01 : f32
    %2 = vector.broadcast %cst : f32 to vector<1x256xf32>
    %3 = arith.maximumf %2, %1 : vector<1x256xf32>
    %4 = vector.broadcast %cst_2 : f32 to vector<1x256xf32>
    %5 = arith.minimumf %4, %3 : vector<1x256xf32>
    %c0_3 = arith.constant 0 : index
    %c1 = arith.constant 1 : index
    %c0_4 = arith.constant 0 : index
    %6 = vector.load %arg3[%c0_3, %c1, %c0_4] : memref<1x2x256xf32, #tpu.memory_space<vmem>>, vector<1x1x256xf32>
    %7 = vector.shape_cast %6 : vector<1x1x256xf32> to vector<1x256xf32>
    %cst_5 = arith.constant 0.000000e+00 : f32
    %cst_6 = arith.constant 1.500000e+01 : f32
    %8 = vector.broadcast %cst_5 : f32 to vector<1x256xf32>
    %9 = arith.maximumf %8, %7 : vector<1x256xf32>
    %10 = vector.broadcast %cst_6 : f32 to vector<1x256xf32>
    %11 = arith.minimumf %10, %9 : vector<1x256xf32>
    %12 = tpu.iota {dimensions = array<i32: 0>} : vector<16x256xi32>
    %13 = arith.sitofp %12 : vector<16x256xi32> to vector<16x256xf32>
    %14 = tpu.iota {dimensions = array<i32: 0>} : vector<16x256xi32>
    %15 = arith.sitofp %14 : vector<16x256xi32> to vector<16x256xf32>
    %16 = vector.broadcast %11 : vector<1x256xf32> to vector<16x256xf32>
    %17 = arith.subf %13, %16 : vector<16x256xf32>
    %18 = math.absf %17 : vector<16x256xf32>
    %cst_7 = arith.constant 1.000000e+00 : f32
    %19 = vector.broadcast %cst_7 : f32 to vector<16x256xf32>
    %20 = arith.subf %19, %18 : vector<16x256xf32>
    %cst_8 = arith.constant 0.000000e+00 : f32
    %21 = vector.broadcast %cst_8 : f32 to vector<16x256xf32>
    %22 = arith.maximumf %20, %21 : vector<16x256xf32>
    %23 = vector.broadcast %5 : vector<1x256xf32> to vector<16x256xf32>
    %24 = arith.subf %15, %23 : vector<16x256xf32>
    %25 = math.absf %24 : vector<16x256xf32>
    %cst_9 = arith.constant 1.000000e+00 : f32
    %26 = vector.broadcast %cst_9 : f32 to vector<16x256xf32>
    %27 = arith.subf %26, %25 : vector<16x256xf32>
    %cst_10 = arith.constant 0.000000e+00 : f32
    %28 = vector.broadcast %cst_10 : f32 to vector<16x256xf32>
    %29 = arith.maximumf %27, %28 : vector<16x256xf32>
    %30 = arith.truncf %22 : vector<16x256xf32> to vector<16x256xbf16>
    %c0_11 = arith.constant 0 : index
    %c0_12 = arith.constant 0 : index
    %c0_13 = arith.constant 0 : index
    %31 = vector.load %arg2[%c0_11, %c0_12, %c0_13] : memref<1x64x16xbf16, #tpu.memory_space<vmem>>, vector<1x64x16xbf16>
    %32 = vector.shape_cast %31 : vector<1x64x16xbf16> to vector<64x16xbf16>
    %cst_14 = arith.constant dense<0.000000e+00> : vector<64x256xf32>
    %33 = tpu.matmul %32, %30, %cst_14 {dimension_numbers = #tpu.dot_dimension_numbers<[1], [0], [0], [1], [0, 0, 1, 1], [], []>} : vector<64x16xbf16>, vector<16x256xbf16>, vector<64x256xf32> -> vector<64x256xf32>
    %34 = vector.shape_cast %33 : vector<64x256xf32> to vector<4x16x256xf32>
    %35 = vector.shape_cast %29 : vector<16x256xf32> to vector<1x16x256xf32>
    %36 = vector.broadcast %35 : vector<1x16x256xf32> to vector<4x16x256xf32>
    %37 = arith.mulf %34, %36 : vector<4x16x256xf32>
    %cst_15 = arith.constant dense<0.000000e+00> : vector<4x256xf32>
    %38 = vector.multi_reduction <add>, %37, %cst_15 [1] : vector<4x16x256xf32> to vector<4x256xf32>
    %c0_16 = arith.constant 0 : index
    %c0_17 = arith.constant 0 : index
    %c0_18 = arith.constant 0 : index
    %39 = vector.load %arg4[%c0_16, %c0_17, %c0_18] : memref<1x4x256xf32, #tpu.memory_space<vmem>>, vector<1x4x256xf32>
    %40 = vector.shape_cast %39 : vector<1x4x256xf32> to vector<4x256xf32>
    %41 = vector.shape_cast %38 : vector<4x256xf32> to vector<1x4x256xf32>
    tpu.vector_store %arg4[%c0_16, %c0_17, %c0_18], %41 {strides = array<i32>} : memref<1x4x256xf32, #tpu.memory_space<vmem>>, vector<1x4x256xf32>,
    return
  }
  func.func @transform_0(%arg0: i32, %arg1: i32) -> (i32, i32, i32) {
    %c0_i32 = arith.constant 0 : i32
    %c0_i32_0 = arith.constant 0 : i32
    %c0_i32_1 = arith.constant 0 : i32
    return %arg0, %c0_i32, %c0_i32_0 : i32, i32, i32
  }
  func.func @transform_1(%arg0: i32, %arg1: i32) -> (i32, i32, i32) {
    %c0_i32 = arith.constant 0 : i32
    %c0_i32_0 = arith.constant 0 : i32
    return %arg0, %c0_i32, %arg1 : i32, i32, i32
  }
  func.func @transform_2(%arg0: i32, %arg1: i32) -> (i32, i32, i32) {
    %c0_i32 = arith.constant 0 : i32
    %c0_i32_0 = arith.constant 0 : i32
    return %arg0, %c0_i32, %arg1 : i32, i32, i32
  }
}

</mosaic_0001>

<llo_original>
// kernel: tpu_custom_call.1
$region0: #{tpu_custom_call.1}
  #allocation0 [shape = 'u32[]', space=smem, size = 0x4, offset = 0x4, fixed_abs, tag = 'smem constant byte address 0x4 - core index']
  #allocation1 [shape = 'u32[144,128]{1,0:T(1,128)}', space=vmem, size = 0x12000, scoped, tag = 'internal scratch']
  %s0 = inlined_call_operand.vmem [shape: bf16[2,64,16], index: 0, kind: input, shape index: {}]
  %s1 = inlined_call_operand.vmem [shape: f32[2,2,256], index: 1, kind: input, shape index: {}]
  %s2 = inlined_call_operand.hbm [shape: f32[2,4,256], index: 2, kind: output, shape index: {}]
  %s3 = sld [smem:[#allocation0]]
  $region41: #{tpu_custom_call.1} parent=0
    _
  %s5 = ssub.s32 1, %s3
  %s6 = scalar_select 0, %s5, %s3
  $region1: #{tpu_custom_call.1} parent=0
    #allocation2 [shape = 'u8[8192]{0}', space=vmem, size = 0x2000, scoped, tag = 'output window, operand 0']
    #allocation3 [shape = 's32[2]{0}', space=sflag, size = 0x8, scoped, tag = 'scoped memory for tpu_custom_call.1']
    %7 = vsyncpa [#allocation3], 0
    %s8 = scalar_lea.sflag [#allocation3], 1
    %9 = vsyncpa %s8, 0
    loop: start=0, step=1, limit=4
    $region2: #{tpu_custom_call.1} parent=1 // loop_pre_header
      _
    $region3: #{tpu_custom_call.1} parent=1 // loop_header
      %s11 = sphi 0, %s15
      %p12 = scmp.ge.s32.totalorder %s11, 4
      %s18 = sphi 0, %s30
      %s19 = sphi 0, %s26
      %s20 = sphi 0, %s18
      %s21 = sphi 0, %s19
      %s22 = sphi 0, %s20
      %s23 = sphi 0, %s21
      %s33 = sphi 0, %s35
      %s36 = sphi 0, %s33
      %s37 = sphi 0, %s36
      %s53 = sphi 0, %s37
      %s61 = sphi 0, %s63
      %s64 = sphi 0, %s61
      %s65 = sphi 0, %s64
      %s81 = sphi 0, %s65
      %s89 = sphi 0, %s91
      %s92 = sphi 0, %s89
      %s93 = sphi 0, %s92
      %s109 = sphi 0, %s93
    $region4: #{tpu_custom_call.1} parent=1 // loop_header_branch
      %14 = sbr.rel (%p12) target = $region8
    $region5: #{tpu_custom_call.1} parent=1 // loop_body
      %s16 = ssub.s32 %s11, 1
      %s17 = ssub.s32 %s11, 2
      %s24 = sadd.s32 1, %s19
      %p25 = scmp.ge.s32.totalorder %s24, 1
      %s26 = scalar_select %p25, 0, %s24
      %s27 = sadd.s32 1, %s18
      %s28 = scalar_select %p25, %s27, %s18
      %p29 = scmp.ge.s32.totalorder %s28, 2
      %s30 = scalar_select %p29, 0, %s28
      %s31 = ssub.s32 %s18, %s30
      %p32 = scmp.eq.s32.totalorder %s31, 0
      %s34 = sadd.s32 %s33, 1
      %s35 = scalar_select %p32, %s33, %s34
      %p38 = pneg %p32
      %p39 = scmp.eq.s32.totalorder %s11, 1
      %p40 = por %p38, %p39
      %p41 = scmp.ne.s32.totalorder %s33, %s36
      %p42 = scmp.eq.s32.totalorder %s11, 0
      %p43 = por %p41, %p42
      %p44 = scmp.ne.s32.totalorder %s33, %s36
      %p45 = scmp.eq.s32.totalorder %s16, 1
      %p46 = por %p44, %p45
      %p47 = scmp.ne.s32.totalorder %s36, %s37
      %p48 = scmp.eq.s32.totalorder %s16, 0
      %p49 = por %p47, %p48
      %p50 = scmp.ne.s32.totalorder %s36, %s37
      %p51 = scmp.eq.s32.totalorder %s17, 1
      %p52 = por %p50, %p51
      %p54 = scmp.ne.s32.totalorder %s37, %s53
      %p55 = scmp.eq.s32.totalorder %s17, 0
      %p56 = por %p54, %p55
      %s57 = ssub.s32 %s18, %s30
      %s58 = ssub.s32 %s19, %s26
      %s59 = sor.u32 %s57, %s58
      %p60 = scmp.eq.s32.totalorder %s59, 0
      %s62 = sadd.s32 %s61, 1
      %s63 = scalar_select %p60, %s61, %s62
      %p66 = pneg %p60
      %p67 = scmp.eq.s32.totalorder %s11, 1
      %p68 = por %p66, %p67
      %p69 = scmp.ne.s32.totalorder %s61, %s64
      %p70 = scmp.eq.s32.totalorder %s11, 0
      %p71 = por %p69, %p70
      %p72 = scmp.ne.s32.totalorder %s61, %s64
      %p73 = scmp.eq.s32.totalorder %s16, 1
      %p74 = por %p72, %p73
      %p75 = scmp.ne.s32.totalorder %s64, %s65
      %p76 = scmp.eq.s32.totalorder %s16, 0
      %p77 = por %p75, %p76
      %p78 = scmp.ne.s32.totalorder %s64, %s65
      %p79 = scmp.eq.s32.totalorder %s17, 1
      %p80 = por %p78, %p79
      %p82 = scmp.ne.s32.totalorder %s65, %s81
      %p83 = scmp.eq.s32.totalorder %s17, 0
      %p84 = por %p82, %p83
      %s85 = ssub.s32 %s18, %s30
      %s86 = ssub.s32 %s19, %s26
      %s87 = sor.u32 %s85, %s86
      %p88 = scmp.eq.s32.totalorder %s87, 0
      %s90 = sadd.s32 %s89, 1
      %s91 = scalar_select %p88, %s89, %s90
      %p94 = pneg %p88
      %p95 = scmp.eq.s32.totalorder %s11, 1
      %p96 = por %p94, %p95
      %p97 = scmp.ne.s32.totalorder %s89, %s92
      %p98 = scmp.eq.s32.totalorder %s11, 0
      %p99 = por %p97, %p98
      %p100 = scmp.ne.s32.totalorder %s89, %s92
      %p101 = scmp.eq.s32.totalorder %s16, 1
      %p102 = por %p100, %p101
      %p103 = scmp.ne.s32.totalorder %s92, %s93
      %p104 = scmp.eq.s32.totalorder %s16, 0
      %p105 = por %p103, %p104
      %p106 = scmp.ne.s32.totalorder %s92, %s93
      %p107 = scmp.eq.s32.totalorder %s17, 1
      %p108 = por %p106, %p107
      %p110 = scmp.ne.s32.totalorder %s93, %s109
      %p111 = scmp.eq.s32.totalorder %s17, 0
      %p112 = por %p110, %p111
      %p113 = scmp.le.s32.totalorder 1, %s11
      %p114 = scmp.lt.s32.totalorder %s11, 3
      %p115 = pnand %p113, %p114
      %p116 = pneg %p115
      // Predicated region
      $region9: #{tpu_custom_call.1} parent=5 // pred_check
        _
      $region10: #{tpu_custom_call.1} parent=5 // pred_check_branch
        %118 = sbr.rel (%p115) target = $region12
      $region11: #{tpu_custom_call.1} parent=5 // pred_region
        %s119 = ssub.s32 %s11, 1
      $region12: #{tpu_custom_call.1} parent=5 // pred_fallthru
        _
      %p120 = scmp.lt.s32.totalorder %s11, 2
      // Predicated region
      $region13: #{tpu_custom_call.1} parent=5 // pred_check
        %p121 = pneg %p120
      $region14: #{tpu_custom_call.1} parent=5 // pred_check_branch
        %123 = sbr.rel (%p121) target = $region16
      $region15: #{tpu_custom_call.1} parent=5 // pred_region
        // Predicated region
        $region17: #{tpu_custom_call.1} parent=15 // pred_check
          %p124 = pneg %p43
        $region18: #{tpu_custom_call.1} parent=15 // pred_check_branch
          %126 = sbr.rel (%p124) target = $region20
        $region19: #{tpu_custom_call.1} parent=15 // pred_region
          %p127 = scmp.lt.s32.totalorder %s18, 1
          %s128 = scalar_select %p127, %s18, 1
          %s129 = smul.addr %s128, 8
          %s130 = smul.addr %s129, 4
          %s131 = scalar_lea.vmem %s0, %s130
        $region20: #{tpu_custom_call.1} parent=15 // pred_fallthru
          _
        // Predicated region
        $region21: #{tpu_custom_call.1} parent=15 // pred_check
          %p132 = pneg %p71
        $region22: #{tpu_custom_call.1} parent=15 // pred_check_branch
          %134 = sbr.rel (%p132) target = $region24
        $region23: #{tpu_custom_call.1} parent=15 // pred_region
          %s135 = smul.u32 2, %s19
          %p136 = scmp.lt.s32.totalorder %s18, 1
          %s137 = scalar_select %p136, %s18, 1
          %p138 = scmp.lt.s32.totalorder %s135, 1
          %s139 = scalar_select %p138, %s135, 1
          %s140 = smul.addr %s137, 2
          %s141 = sadd.s32 %s139, %s140
          %s142 = smul.addr %s141, 2
          %s143 = scalar_lea.vmem %s1, %s142
          %s144 = smul.u32 2, %s19
        $region24: #{tpu_custom_call.1} parent=15 // pred_fallthru
          _
      $region16: #{tpu_custom_call.1} parent=5 // pred_fallthru
        _
      %p145 = scmp.le.s32.totalorder 1, %s11
      %p146 = scmp.lt.s32.totalorder %s11, 3
      %p147 = pnand %p145, %p146
      %p148 = pneg %p147
      // Predicated region
      $region25: #{tpu_custom_call.1} parent=5 // pred_check
        _
      $region26: #{tpu_custom_call.1} parent=5 // pred_check_branch
        %150 = sbr.rel (%p147) target = $region28
      $region27: #{tpu_custom_call.1} parent=5 // pred_region
        %s151 = ssub.s32 %s11, 1
        %p152 = scmp.lt.s32.totalorder %s20, 1
        %s153 = scalar_select %p152, %s20, 1
        %s154 = smul.addr %s153, 8
        %s155 = smul.addr %s154, 4
        %s156 = scalar_lea.vmem %s0, %s155
        %p157 = pneg %p49
        %p158 = pneg %p46
        %s159 = smul.u32 2, %s21
        %p160 = scmp.lt.s32.totalorder %s20, 1
        %s161 = scalar_select %p160, %s20, 1
        %p162 = scmp.lt.s32.totalorder %s159, 1
        %s163 = scalar_select %p162, %s159, 1
        %s164 = smul.addr %s161, 2
        %s165 = sadd.s32 %s163, %s164
        %s166 = smul.addr %s165, 2
        %s167 = scalar_lea.vmem %s1, %s166
        %p168 = pneg %p77
        %p169 = pneg %p74
        %p170 = pneg %p105
        %p171 = pneg %p102
        %s172 = sand.u32 %s92, 1
        %s173 = scalar_lea.sflag [#allocation3], %s172
        %s174 = sand.u32 %s92, 1
        %s175 = smul.addr %s174, 8
        %s176 = scalar_lea.vmem [#allocation2], %s175
        %p177 = scmp.lt.s32.totalorder %s20, 1
        %s178 = scalar_select %p177, %s20, 1
        %s179 = smul.addr %s178, 8
        %s180 = smul.addr %s179, 4
        %s181 = scalar_lea.vmem %s0, %s180
        %s182 = smul.u32 2, %s21
        %p183 = scmp.lt.s32.totalorder %s20, 1
        %s184 = scalar_select %p183, %s20, 1
        %p185 = scmp.lt.s32.totalorder %s182, 1
        %s186 = scalar_select %p185, %s182, 1
        %s187 = smul.addr %s184, 2
        %s188 = sadd.s32 %s186, %s187
        %s189 = smul.addr %s188, 2
        %s190 = scalar_lea.vmem %s1, %s189
        %s191 = smul.u32 2, %s21
        %s192 = smul.u32 2, %s21
        %v194 = vld [vmem:[%s190] ss:$2 sm:$0x3]
        %v195 = vmax.f32 %v194, 0.0
        %v196 = vmin.f32 %v195, 15.0
        %s197 = scalar_lea.vmem %s190, 1
        %v198 = vld [vmem:[%s197] ss:$2 sm:$0x3]
        %v199 = vmax.f32 %v198, 0.0
        %v200 = vmin.f32 %v199, 15.0
        %v201 = vlaneseq
        %v202 = vshrl.u32 %v201, 7
        %v203 = vadd.s32 %v202, 8
        %v204 = vcvt.s32.f32 %v202
        %v205 = vcvt.s32.f32 %v203
        %v207 = vlaneseq
        %v208 = vshrl.u32 %v207, 7
        %v209 = vsub.s32 0, %v208
        %v210 = vrot.slane %v200, %v209
        %v211 = vlaneseq
        %v212 = vshrl.u32 %v211, 7
        %v213 = vsub.s32 1, %v212
        %v214 = vrot.slane %v200, %v213
        %v217 = vsub.f32 %v204, %v210
        %v218 = vsub.f32 %v204, %v214
        %v219 = vsub.f32 %v205, %v210
        %v220 = vsub.f32 %v205, %v214
        %v221 = vand.u32 2147483647, %v217
        %v222 = vand.u32 2147483647, %v218
        %v223 = vand.u32 2147483647, %v219
        %v224 = vand.u32 2147483647, %v220
        %v225 = vsub.f32 1.0, %v221
        %v226 = vsub.f32 1.0, %v222
        %v227 = vsub.f32 1.0, %v223
        %v228 = vsub.f32 1.0, %v224
        %v229 = vmax.f32 %v225, 0.0
        %v230 = vmax.f32 %v226, 0.0
        %v231 = vmax.f32 %v227, 0.0
        %v232 = vmax.f32 %v228, 0.0
        %v234 = vlaneseq
        %v235 = vshrl.u32 %v234, 7
        %v236 = vsub.s32 0, %v235
        %v237 = vrot.slane %v196, %v236
        %v238 = vlaneseq
        %v239 = vshrl.u32 %v238, 7
        %v240 = vsub.s32 1, %v239
        %v241 = vrot.slane %v196, %v240
        %v244 = vsub.f32 %v204, %v237
        %v245 = vsub.f32 %v204, %v241
        %v246 = vsub.f32 %v205, %v237
        %v247 = vsub.f32 %v205, %v241
        %v248 = vand.u32 2147483647, %v244
        %v249 = vand.u32 2147483647, %v245
        %v250 = vand.u32 2147483647, %v246
        %v251 = vand.u32 2147483647, %v247
        %v252 = vsub.f32 1.0, %v248
        %v253 = vsub.f32 1.0, %v249
        %v254 = vsub.f32 1.0, %v250
        %v255 = vsub.f32 1.0, %v251
        %v256 = vmax.f32 %v252, 0.0
        %v257 = vmax.f32 %v253, 0.0
        %v258 = vmax.f32 %v254, 0.0
        %v259 = vmax.f32 %v255, 0.0
        %v260 = vpack.c.bf16 %v231, %v229
        %v261 = vpack.c.bf16 %v232, %v230
        %v262 = vld [vmem:[%s181] sm:$0xf]
        %v263 = vld [vmem:[%s181 + $0x4] sm:$0xf]
        %v264 = vld [vmem:[%s181 + $0x8] sm:$0xf]
        %v265 = vld [vmem:[%s181 + $0xc] sm:$0xf]
        %v266 = vld [vmem:[%s181 + $0x10] sm:$0xf]
        %v267 = vld [vmem:[%s181 + $0x14] sm:$0xf]
        %v268 = vld [vmem:[%s181 + $0x18] sm:$0xf]
        %v269 = vld [vmem:[%s181 + $0x1c] sm:$0xf]
        %v278 = vunpack.c.l.b16 %v262
        %v279 = vunpack.c.l.b16 %v263
        %v280 = vunpack.c.l.b16 %v264
        %v281 = vunpack.c.l.b16 %v265
        %v282 = vunpack.c.l.b16 %v266
        %v283 = vunpack.c.l.b16 %v267
        %v284 = vunpack.c.l.b16 %v268
        %v285 = vunpack.c.l.b16 %v269
        %v286 = vpack.c.b16 %v279, %v278
        %v287 = vpack.c.b16 %v281, %v280
        %v288 = vpack.c.b16 %v283, %v282
        %v289 = vpack.c.b16 %v285, %v284
        %vm290 = vcmask 130048
        %v292 = vsel %vm290, %v286, 0
        %v295 = vsel %vm290, %v287, 0
        %v298 = vsel %vm290, %v288, 0
        %v301 = vsel %vm290, %v289, 0
        %303 = vmatprep.subr.bf16.mxu0 %v261
        %304 = vmatpush1.bf16.msra.mxu0 %v260
        %305 = vmatprep.subr.bf16.mxu0 0
        %306 = vmatpush1.bf16.msra.mxu0 0
        %307 = vmatprep.subr.bf16.mxu0 0
        %308 = vmatpush1.bf16.msra.mxu0 0
        %309 = vmatprep.subr.bf16.mxu0 0
        %310 = vmatpush1.bf16.msra.mxu0 0
        %311 = vmatprep.subr.bf16.mxu0 0
        %312 = vmatpush1.bf16.msra.mxu0 0
        %313 = vmatprep.subr.bf16.mxu0 0
        %314 = vmatpush1.bf16.msra.mxu0 0
        %315 = vmatprep.subr.bf16.mxu0 0
        %316 = vmatpush1.bf16.msra.mxu0 0
        %317 = vmatprep.subr.bf16.mxu0 0
        %318 = vmatpush1.bf16.msra.mxu0 0
        %319 = vmatprep.subr.bf16.mxu0 0
        %320 = vmatpush1.bf16.msra.mxu0 0
        %321 = vmatprep.subr.bf16.mxu0 0
        %322 = vmatpush1.bf16.msra.mxu0 0
        %323 = vmatprep.subr.bf16.mxu0 0
        %324 = vmatpush1.bf16.msra.mxu0 0
        %325 = vmatprep.subr.bf16.mxu0 0
        %326 = vmatpush1.bf16.msra.mxu0 0
        %327 = vmatprep.subr.bf16.mxu0 0
        %328 = vmatpush1.bf16.msra.mxu0 0
        %329 = vmatprep.subr.bf16.mxu0 0
        %330 = vmatpush1.bf16.msra.mxu0 0
        %331 = vmatprep.subr.bf16.mxu0 0
        %332 = vmatpush1.bf16.msra.mxu0 0
        %333 = vmatprep.subr.bf16.mxu0 0
        %334 = vmatpush1.bf16.msra.mxu0 0
        %335 = vmatprep.mubr.bf16.mxu0 0
        %336 = vmatmul.mubr.bf16.gmra.mrb[0].mxu0 %v292
        %v337 = vpop.f32.mrb[0].mxu0
        %v338 = vadd.f32 0.0, %v337
        %v339 = vpop.f32.mrb[0].mxu0
        %v340 = vadd.f32 0.0, %v339
        %v341 = vpop.f32.mrb[0].mxu0
        %v342 = vadd.f32 0.0, %v341
        %v343 = vpop.f32.mrb[0].mxu0
        %v344 = vadd.f32 0.0, %v343
        %345 = vmatprep.mubr.bf16.mxu0 0
        %346 = vmatmul.mubr.bf16.gmra.mrb[0].mxu0 %v295
        %v347 = vpop.f32.mrb[0].mxu0
        %v348 = vadd.f32 0.0, %v347
        %v349 = vpop.f32.mrb[0].mxu0
        %v350 = vadd.f32 0.0, %v349
        %v351 = vpop.f32.mrb[0].mxu0
        %v352 = vadd.f32 0.0, %v351
        %v353 = vpop.f32.mrb[0].mxu0
        %v354 = vadd.f32 0.0, %v353
        %355 = vmatprep.mubr.bf16.mxu0 0
        %356 = vmatmul.mubr.bf16.gmra.mrb[0].mxu0 %v298
        %v357 = vpop.f32.mrb[0].mxu0
        %v358 = vadd.f32 0.0, %v357
        %v359 = vpop.f32.mrb[0].mxu0
        %v360 = vadd.f32 0.0, %v359
        %v361 = vpop.f32.mrb[0].mxu0
        %v362 = vadd.f32 0.0, %v361
        %v363 = vpop.f32.mrb[0].mxu0
        %v364 = vadd.f32 0.0, %v363
        %365 = vmatprep.mubr.bf16.mxu0 0
        %366 = vmatmul.mubr.bf16.gmra.mrb[0].mxu0 %v301
        %v367 = vpop.f32.mrb[0].mxu0
        %v368 = vadd.f32 0.0, %v367
        %v369 = vpop.f32.mrb[0].mxu0
        %v370 = vadd.f32 0.0, %v369
        %v371 = vpop.f32.mrb[0].mxu0
        %v372 = vadd.f32 0.0, %v371
        %v373 = vpop.f32.mrb[0].mxu0
        %v374 = vadd.f32 0.0, %v373
        %375 = vdwg.mxu0
        %v376 = vmul.f32 %v338, %v256
        %v377 = vmul.f32 %v340, %v257
        %v378 = vmul.f32 %v342, %v258
        %v379 = vmul.f32 %v344, %v259
        %v380 = vmul.f32 %v348, %v256
        %v381 = vmul.f32 %v350, %v257
        %v382 = vmul.f32 %v352, %v258
        %v383 = vmul.f32 %v354, %v259
        %v384 = vmul.f32 %v358, %v256
        %v385 = vmul.f32 %v360, %v257
        %v386 = vmul.f32 %v362, %v258
        %v387 = vmul.f32 %v364, %v259
        %v388 = vmul.f32 %v368, %v256
        %v389 = vmul.f32 %v370, %v257
        %v390 = vmul.f32 %v372, %v258
        %v391 = vmul.f32 %v374, %v259
        %v392 = vadd.f32 %v376, %v378
        %v393 = vrot.slane %v392, 4
        %v394 = vadd.f32 %v392, %v393
        %v395 = vrot.slane %v394, 2
        %v396 = vadd.f32 %v394, %v395
        %v397 = vrot.slane %v396, 1
        %v398 = vadd.f32 %v396, %v397
        %v399 = vadd.f32 %v377, %v379
        %v400 = vrot.slane %v399, 4
        %v401 = vadd.f32 %v399, %v400
        %v402 = vrot.slane %v401, 2
        %v403 = vadd.f32 %v401, %v402
        %v404 = vrot.slane %v403, 1
        %v405 = vadd.f32 %v403, %v404
        %v406 = vadd.f32 %v380, %v382
        %v407 = vrot.slane %v406, 4
        %v408 = vadd.f32 %v406, %v407
        %v409 = vrot.slane %v408, 2
        %v410 = vadd.f32 %v408, %v409
        %v411 = vrot.slane %v410, 1
        %v412 = vadd.f32 %v410, %v411
        %v413 = vadd.f32 %v381, %v383
        %v414 = vrot.slane %v413, 4
        %v415 = vadd.f32 %v413, %v414
        %v416 = vrot.slane %v415, 2
        %v417 = vadd.f32 %v415, %v416
        %v418 = vrot.slane %v417, 1
        %v419 = vadd.f32 %v417, %v418
        %v420 = vadd.f32 %v384, %v386
        %v421 = vrot.slane %v420, 4
        %v422 = vadd.f32 %v420, %v421
        %v423 = vrot.slane %v422, 2
        %v424 = vadd.f32 %v422, %v423
        %v425 = vrot.slane %v424, 1
        %v426 = vadd.f32 %v424, %v425
        %v427 = vadd.f32 %v385, %v387
        %v428 = vrot.slane %v427, 4
        %v429 = vadd.f32 %v427, %v428
        %v430 = vrot.slane %v429, 2
        %v431 = vadd.f32 %v429, %v430
        %v432 = vrot.slane %v431, 1
        %v433 = vadd.f32 %v431, %v432
        %v434 = vadd.f32 %v388, %v390
        %v435 = vrot.slane %v434, 4
        %v436 = vadd.f32 %v434, %v435
        %v437 = vrot.slane %v436, 2
        %v438 = vadd.f32 %v436, %v437
        %v439 = vrot.slane %v438, 1
        %v440 = vadd.f32 %v438, %v439
        %v441 = vadd.f32 %v389, %v391
        %v442 = vrot.slane %v441, 4
        %v443 = vadd.f32 %v441, %v442
        %v444 = vrot.slane %v443, 2
        %v445 = vadd.f32 %v443, %v444
        %v446 = vrot.slane %v445, 1
        %v447 = vadd.f32 %v445, %v446
        %v456 = vcombine.low %v398, %v405
        %v457 = vcombine.low %v412, %v419
        %v458 = vcombine.low %v426, %v433
        %v459 = vcombine.low %v440, %v447
        %v460 = vrot.slane %v457, 7
        %vm461 = vcmask 1041409
        %v462 = vsel %vm461, %v460, %v456
        %vm463 = vcmask 1045509
        %v464 = vsel %vm463, %v460, %v462
        %v465 = vrot.slane %v458, 6
        %vm466 = vcmask 1042434
        %v467 = vsel %vm466, %v465, %v464
        %vm468 = vcmask 1046534
        %v469 = vsel %vm468, %v465, %v467
        %v470 = vrot.slane %v459, 5
        %vm471 = vcmask 1043459
        %v472 = vsel %vm471, %v470, %v469
        %vm473 = vcmask 1047559
        %v474 = vsel %vm473, %v470, %v472
        %476 = vst [vmem:[%s176] sm:$0xff] %v474
        %s477 = sand.u32 %s92, 1
        %s478 = scalar_lea.sflag [#allocation3], %s477
        %s479 = sand.u32 %s92, 1
        %s480 = smul.addr %s479, 8
        %s481 = scalar_lea.vmem [#allocation2], %s480
        // Predicated region
        $region29: #{tpu_custom_call.1} parent=27 // pred_check
          %p482 = pneg %p102
        $region30: #{tpu_custom_call.1} parent=27 // pred_check_branch
          %484 = sbr.rel (%p482) target = $region32
        $region31: #{tpu_custom_call.1} parent=27 // pred_region
          %s485 = smul.u32 2, %s21
          %s487 = ssub.s32 128, 128
          %488 = vsyncadd %s478, %s487
          %s489 = smul.addr %s20, 2
          %s490 = sadd.s32 %s485, %s489
          %s491 = smul.addr %s490, 64
          %s492 = scalar_lea.hbm %s2, %s491
          %s494 = sshll.u32 %s481, 4
          %s495 = int_to_ptr.vmem [resolvable:$true] %s494
          %497 = dma.vmem_to_hbm [thread:$0]  %s495, 128, %s492, %s478
        $region32: #{tpu_custom_call.1} parent=27 // pred_fallthru
          _
      $region28: #{tpu_custom_call.1} parent=5 // pred_fallthru
        _
      %p498 = scmp.le.s32.totalorder 2, %s11
      // Predicated region
      $region33: #{tpu_custom_call.1} parent=5 // pred_check
        %p499 = pneg %p498
      $region34: #{tpu_custom_call.1} parent=5 // pred_check_branch
        %501 = sbr.rel (%p499) target = $region36
      $region35: #{tpu_custom_call.1} parent=5 // pred_region
        %s502 = ssub.s32 %s11, 2
        // Predicated region
        $region37: #{tpu_custom_call.1} parent=35 // pred_check
          %p503 = pneg %p108
        $region38: #{tpu_custom_call.1} parent=35 // pred_check_branch
          %505 = sbr.rel (%p503) target = $region40
        $region39: #{tpu_custom_call.1} parent=35 // pred_region
          %s506 = sand.u32 %s93, 1
          %s507 = scalar_lea.sflag [#allocation3], %s506
          %s508 = sand.u32 %s93, 1
          %s509 = smul.addr %s508, 8
          %s510 = scalar_lea.vmem [#allocation2], %s509
          %511 = dma.done %s507, 128
        $region40: #{tpu_custom_call.1} parent=35 // pred_fallthru
          _
      $region36: #{tpu_custom_call.1} parent=5 // pred_fallthru
        _
    $region6: #{tpu_custom_call.1} parent=1 // loop_footer
      %s15 = sadd.s32 1, %s11
    $region7: #{tpu_custom_call.1} parent=1 // loop_footer_branch
      %10 = sbr.rel target = $region3
    $region8: #{tpu_custom_call.1} parent=1 // loop_exit
      _
    %512 = vsyncpa [#allocation3], 1
    %s513 = scalar_lea.sflag [#allocation3], 1
    %514 = vsyncpa %s513, 1

</llo_original>
